<compile_context>
chip_gen: v6e
topology: v6e:2x2x1
jax: 0.10.0
libtpu: 0.0.40
codegen_flags: <defaults>
</compile_context>

<pallas_src>
import jax
import jax.numpy as jnp
from jax.experimental import pallas as pl
from jax.experimental.pallas import tpu as pltpu

IGNORE_INDEX = -100
LANES = 128
MAX_TILE_ROWS = 1024  # 1024x128 f32 = 512 KiB per logit-plane pipeline buffer


def _intent_loss_kernel(l0_ref, l1_ref, tgt_ref, out_ref, sum_sc, cnt_sc):
    # l0_ref, l1_ref : (tile_r, 128) logits for class 0 / class 1
    # tgt_ref        : (tile_r, 128) int8 targets in {0, 1, IGNORE_INDEX}
    # out_ref        : (1, 1) f32 mean loss
    # sum_sc, cnt_sc : (1, 128) f32 per-lane accumulators (persist across grid)
    pid = pl.program_id(0)

    @pl.when(pid == 0)
    def _init():
        sum_sc[...] = jnp.zeros_like(sum_sc)
        cnt_sc[...] = jnp.zeros_like(cnt_sc)

    l0 = l0_ref[...].astype(jnp.float32)
    l1 = l1_ref[...].astype(jnp.float32)
    tgt = tgt_ref[...].astype(jnp.int32)

    valid = tgt != IGNORE_INDEX

    # 2-class cross-entropy closed form:
    #   loss = log(exp(l0) + exp(l1)) - l_target = softplus(l_other - l_target)
    d = jnp.where(tgt == 0, l1 - l0, l0 - l1)
    per_row = jnp.maximum(d, 0.0) + jnp.log(1.0 + jnp.exp(-jnp.abs(d)))
    per_row = jnp.where(valid, per_row, 0.0)

    # Per-lane (sublane-only) partial reductions; cheap per-tile work.
    sum_sc[...] += jnp.sum(per_row, axis=0, keepdims=True)
    cnt_sc[...] += jnp.sum(valid.astype(jnp.float32), axis=0, keepdims=True)

    @pl.when(pid == pl.num_programs(0) - 1)
    def _finalize():
        total = jnp.sum(sum_sc[...], axis=-1, keepdims=True)   # (1, 1)
        count = jnp.sum(cnt_sc[...], axis=-1, keepdims=True)   # (1, 1)
        # count == 0 (all targets ignored) yields NaN, matching PyTorch.
        out_ref[...] = total / count


def intent_loss(logits, target):
    """logits: (N, n_classes, 2) float; target: (N, n_classes) int."""
    N, C, two = logits.shape
    assert two == 2
    M = N * C

    # Deinterleave the 2-way class axis into two contiguous lane-dense planes.
    l0 = logits[..., 0].reshape(M)
    l1 = logits[..., 1].reshape(M)
    tgt = target.reshape(M).astype(jnp.int8)   # {0, 1, IGNORE_INDEX} fit in int8

    # Pack 128 samples per sublane row; pad rows to a multiple of the tile.
    rows = -(-M // LANES)
    if rows <= MAX_TILE_ROWS:
        tile_r = max(32, -(-rows // 32) * 32)  # multiple of 32 (int8 sublane tile)
    else:
        tile_r = MAX_TILE_ROWS
    rows_pad = -(-rows // tile_r) * tile_r
    pad = rows_pad * LANES - M

    l0 = jnp.pad(l0, (0, pad)).reshape(rows_pad, LANES)
    l1 = jnp.pad(l1, (0, pad)).reshape(rows_pad, LANES)
    tgt = jnp.pad(tgt, (0, pad), constant_values=IGNORE_INDEX).reshape(rows_pad, LANES)

    grid = (rows_pad // tile_r,)
    # The grid axis stays "arbitrary" because the scratch accumulator carries
    # across steps; per-core partial sums would additionally enable v7x megacore.
    out = pl.pallas_call(
        _intent_loss_kernel,
        out_shape=jax.ShapeDtypeStruct((1, 1), jnp.float32),
        grid_spec=pltpu.PrefetchScalarGridSpec(
            num_scalar_prefetch=0,
            grid=grid,
            in_specs=[
                pl.BlockSpec((tile_r, LANES), lambda i: (i, 0)),
                pl.BlockSpec((tile_r, LANES), lambda i: (i, 0)),
                pl.BlockSpec((tile_r, LANES), lambda i: (i, 0)),
            ],
            out_specs=pl.BlockSpec((1, 1), lambda i: (0, 0)),
            scratch_shapes=[
                pltpu.VMEM((1, LANES), jnp.float32),
                pltpu.VMEM((1, LANES), jnp.float32),
            ],
        ),
        compiler_params=pltpu.CompilerParams(
            dimension_semantics=("arbitrary",),
            vmem_limit_bytes=32 * 1024 * 1024,
        ),
    )(l0, l1, tgt)
    return out[0, 0]


def _reference_loss(logits, target):
    """Pure-JAX reference (for sanity check)."""
    flat_logits = logits.reshape(-1, 2).astype(jnp.float32)
    flat_target = target.reshape(-1).astype(jnp.int32)
    logp = jax.nn.log_softmax(flat_logits, axis=-1)
    picked = jnp.take_along_axis(
        logp, jnp.clip(flat_target, 0, 1)[:, None], axis=-1)[:, 0]
    valid = flat_target != IGNORE_INDEX
    return jnp.sum(jnp.where(valid, -picked, 0.0)) / jnp.sum(valid)


if __name__ == "__main__":
    key = jax.random.PRNGKey(0)
    k1, k2, k3, k4 = jax.random.split(key, 4)

    # Small shapes consistent with the module: batch=2, n_classes=4.
    N, n_classes = 2, 4
    logits = jax.random.normal(k1, (N, n_classes, 2), dtype=jnp.float32)
    target = jax.random.bernoulli(k2, 0.5, (N, n_classes)).astype(jnp.int32)
    target = target.at[0, 1].set(IGNORE_INDEX)   # exercise ignore_index path

    loss = intent_loss(logits, target)
    jax.block_until_ready(loss)
    ref = _reference_loss(logits, target)
    assert jnp.allclose(loss, ref, atol=1e-5, rtol=1e-5), (loss, ref)

    # Larger check exercising the multi-tile grid, accumulator and padding.
    N2, C2 = 520, 512
    logits2 = jax.random.normal(k3, (N2, C2, 2), dtype=jnp.float32)
    target2 = jax.random.bernoulli(k4, 0.5, (N2, C2)).astype(jnp.int32)
    loss2 = intent_loss(logits2, target2)
    jax.block_until_ready(loss2)
    ref2 = _reference_loss(logits2, target2)
    assert jnp.allclose(loss2, ref2, atol=1e-4, rtol=1e-4), (loss2, ref2)

    print("KERNEL_OK")
</pallas_src>

<mosaic_0001>
module attributes {stable_mosaic.version = 11 : i64} {
  func.func @_intent_loss_kernel(%arg0: i32, %arg1: memref<32x128xf32, #tpu.memory_space<vmem>>, %arg2: memref<32x128xf32, #tpu.memory_space<vmem>>, %arg3: memref<32x128xi8, #tpu.memory_space<vmem>>, %arg4: memref<1x1xf32, #tpu.memory_space<vmem>>, %arg5: memref<1x128xf32, #tpu.memory_space<vmem>>, %arg6: memref<1x128xf32, #tpu.memory_space<vmem>>) attributes {dimension_semantics = [#tpu.dimension_semantics<arbitrary>], iteration_bounds = array<i64: 1>, scalar_prefetch = 0 : i64, scratch_operands = 2 : i64, tpu.core_type = #tpu.core_type<tc>, window_params = [{transform_indices = @transform_0, window_bounds = array<i64: 32, 128>}, {transform_indices = @transform_1, window_bounds = array<i64: 32, 128>}, {transform_indices = @transform_2, window_bounds = array<i64: 32, 128>}, {pipeline_mode = #tpu.pipeline_mode<synchronous>, transform_indices = @transform_3, window_bounds = array<i64: 1, 1>}]} {
    %c0_i32 = arith.constant 0 : i32
    %0 = arith.cmpi eq, %arg0, %c0_i32 : i32
    %1 = arith.extui %0 : i1 to i32
    %c0_i32_0 = arith.constant 0 : i32
    %2 = arith.cmpi ne, %1, %c0_i32_0 : i32
    scf.if %2 {
      %cst_22 = arith.constant 0.000000e+00 : f32
      %41 = vector.broadcast %cst_22 : f32 to vector<1x128xf32>
      %c0_23 = arith.constant 0 : index
      %c0_24 = arith.constant 0 : index
      %42 = vector.load %arg5[%c0_23, %c0_24] : memref<1x128xf32, #tpu.memory_space<vmem>>, vector<1x128xf32>
      tpu.vector_store %arg5[%c0_23, %c0_24], %41 {strides = array<i32>} : memref<1x128xf32, #tpu.memory_space<vmem>>, vector<1x128xf32>,
      %cst_25 = arith.constant 0.000000e+00 : f32
      %43 = vector.broadcast %cst_25 : f32 to vector<1x128xf32>
      %c0_26 = arith.constant 0 : index
      %c0_27 = arith.constant 0 : index
      %44 = vector.load %arg6[%c0_26, %c0_27] : memref<1x128xf32, #tpu.memory_space<vmem>>, vector<1x128xf32>
      tpu.vector_store %arg6[%c0_26, %c0_27], %43 {strides = array<i32>} : memref<1x128xf32, #tpu.memory_space<vmem>>, vector<1x128xf32>,
    } else {
    }
    %c0 = arith.constant 0 : index
    %c0_1 = arith.constant 0 : index
    %3 = vector.load %arg1[%c0, %c0_1] : memref<32x128xf32, #tpu.memory_space<vmem>>, vector<32x128xf32>
    %c0_2 = arith.constant 0 : index
    %c0_3 = arith.constant 0 : index
    %4 = vector.load %arg2[%c0_2, %c0_3] : memref<32x128xf32, #tpu.memory_space<vmem>>, vector<32x128xf32>
    %c0_4 = arith.constant 0 : index
    %c0_5 = arith.constant 0 : index
    %5 = vector.load %arg3[%c0_4, %c0_5] : memref<32x128xi8, #tpu.memory_space<vmem>>, vector<32x128xi8>
    %6 = arith.extsi %5 : vector<32x128xi8> to vector<32x128xi32>
    %c-100_i32 = arith.constant -100 : i32
    %7 = vector.broadcast %c-100_i32 : i32 to vector<32x128xi32>
    %8 = arith.cmpi ne, %6, %7 : vector<32x128xi32>
    %c0_i32_6 = arith.constant 0 : i32
    %9 = vector.broadcast %c0_i32_6 : i32 to vector<32x128xi32>
    %10 = arith.cmpi eq, %6, %9 : vector<32x128xi32>
    %11 = arith.subf %4, %3 : vector<32x128xf32>
    %12 = arith.subf %3, %4 : vector<32x128xf32>
    %13 = arith.select %10, %11, %12 : vector<32x128xi1>, vector<32x128xf32>
    %cst = arith.constant 0.000000e+00 : f32
    %14 = vector.broadcast %cst : f32 to vector<32x128xf32>
    %15 = arith.maximumf %13, %14 : vector<32x128xf32>
    %16 = math.absf %13 : vector<32x128xf32>
    %cst_7 = arith.constant 0.000000e+00 : f32
    %17 = vector.broadcast %cst_7 : f32 to vector<32x128xf32>
    %18 = arith.subf %17, %16 : vector<32x128xf32>
    %19 = math.exp %18 : vector<32x128xf32>
    %cst_8 = arith.constant 1.000000e+00 : f32
    %20 = vector.broadcast %cst_8 : f32 to vector<32x128xf32>
    %21 = arith.addf %20, %19 : vector<32x128xf32>
    %22 = math.log %21 : vector<32x128xf32>
    %23 = arith.addf %15, %22 : vector<32x128xf32>
    %cst_9 = arith.constant 0.000000e+00 : f32
    %24 = vector.broadcast %cst_9 : f32 to vector<32x128xf32>
    %25 = arith.select %8, %23, %24 : vector<32x128xi1>, vector<32x128xf32>
    %c0_10 = arith.constant 0 : index
    %c0_11 = arith.constant 0 : index
    %26 = vector.load %arg5[%c0_10, %c0_11] : memref<1x128xf32, #tpu.memory_space<vmem>>, vector<1x128xf32>
    %cst_12 = arith.constant dense<0.000000e+00> : vector<128xf32>
    %27 = vector.multi_reduction <add>, %25, %cst_12 [0] : vector<32x128xf32> to vector<128xf32>
    %28 = vector.shape_cast %27 : vector<128xf32> to vector<1x128xf32>
    %29 = arith.addf %26, %28 : vector<1x128xf32>
    %c0_13 = arith.constant 0 : index
    %c0_14 = arith.constant 0 : index
    %30 = vector.load %arg5[%c0_13, %c0_14] : memref<1x128xf32, #tpu.memory_space<vmem>>, vector<1x128xf32>
    tpu.vector_store %arg5[%c0_13, %c0_14], %29 {strides = array<i32>} : memref<1x128xf32, #tpu.memory_space<vmem>>, vector<1x128xf32>,
    %c0_15 = arith.constant 0 : index
    %c0_16 = arith.constant 0 : index
    %31 = vector.load %arg6[%c0_15, %c0_16] : memref<1x128xf32, #tpu.memory_space<vmem>>, vector<1x128xf32>
    %32 = arith.extui %8 : vector<32x128xi1> to vector<32x128xi32>
    %33 = arith.sitofp %32 : vector<32x128xi32> to vector<32x128xf32>
    %cst_17 = arith.constant dense<0.000000e+00> : vector<128xf32>
    %34 = vector.multi_reduction <add>, %33, %cst_17 [0] : vector<32x128xf32> to vector<128xf32>
    %35 = vector.shape_cast %34 : vector<128xf32> to vector<1x128xf32>
    %36 = arith.addf %31, %35 : vector<1x128xf32>
    %c0_18 = arith.constant 0 : index
    %c0_19 = arith.constant 0 : index
    %37 = vector.load %arg6[%c0_18, %c0_19] : memref<1x128xf32, #tpu.memory_space<vmem>>, vector<1x128xf32>
    tpu.vector_store %arg6[%c0_18, %c0_19], %36 {strides = array<i32>} : memref<1x128xf32, #tpu.memory_space<vmem>>, vector<1x128xf32>,
    %c0_i32_20 = arith.constant 0 : i32
    %38 = arith.cmpi eq, %arg0, %c0_i32_20 : i32
    %39 = arith.extui %38 : i1 to i32
    %c0_i32_21 = arith.constant 0 : i32
    %40 = arith.cmpi ne, %39, %c0_i32_21 : i32
    scf.if %40 {
      %c0_22 = arith.constant 0 : index
      %c0_23 = arith.constant 0 : index
      %41 = vector.load %arg5[%c0_22, %c0_23] : memref<1x128xf32, #tpu.memory_space<vmem>>, vector<1x128xf32>
      %cst_24 = arith.constant dense<0.000000e+00> : vector<1xf32>
      %42 = vector.multi_reduction <add>, %41, %cst_24 [1] : vector<1x128xf32> to vector<1xf32>
      %43 = vector.shape_cast %42 : vector<1xf32> to vector<1x1xf32>
      %c0_25 = arith.constant 0 : index
      %c0_26 = arith.constant 0 : index
      %44 = vector.load %arg6[%c0_25, %c0_26] : memref<1x128xf32, #tpu.memory_space<vmem>>, vector<1x128xf32>
      %cst_27 = arith.constant dense<0.000000e+00> : vector<1xf32>
      %45 = vector.multi_reduction <add>, %44, %cst_27 [1] : vector<1x128xf32> to vector<1xf32>
      %46 = vector.shape_cast %45 : vector<1xf32> to vector<1x1xf32>
      %47 = arith.divf %43, %46 : vector<1x1xf32>
      %c0_28 = arith.constant 0 : index
      %c0_29 = arith.constant 0 : index
      %48 = vector.load %arg4[%c0_28, %c0_29] : memref<1x1xf32, #tpu.memory_space<vmem>>, vector<1x1xf32>
      tpu.vector_store %arg4[%c0_28, %c0_29], %47 {strides = array<i32>} : memref<1x1xf32, #tpu.memory_space<vmem>>, vector<1x1xf32>,
    } else {
    }
    return
  }
  func.func @transform_0(%arg0: i32) -> (i32, i32) {
    %c0_i32 = arith.constant 0 : i32
    %c0_i32_0 = arith.constant 0 : i32
    return %arg0, %c0_i32 : i32, i32
  }
  func.func @transform_1(%arg0: i32) -> (i32, i32) {
    %c0_i32 = arith.constant 0 : i32
    %c0_i32_0 = arith.constant 0 : i32
    return %arg0, %c0_i32 : i32, i32
  }
  func.func @transform_2(%arg0: i32) -> (i32, i32) {
    %c0_i32 = arith.constant 0 : i32
    %c0_i32_0 = arith.constant 0 : i32
    return %arg0, %c0_i32 : i32, i32
  }
  func.func @transform_3(%arg0: i32) -> (i32, i32) {
    %c0_i32 = arith.constant 0 : i32
    %c0_i32_0 = arith.constant 0 : i32
    %c0_i32_1 = arith.constant 0 : i32
    return %c0_i32, %c0_i32_0 : i32, i32
  }
}

</mosaic_0001>

<llo_original>
// kernel: tpu_custom_call.1
$region0: #{tpu_custom_call.1}
  #allocation0 [shape = 'u32[]', space=smem, size = 0x4, offset = 0x4, fixed_abs, tag = 'smem constant byte address 0x4 - core index']
  #allocation1 [shape = 'u32[144,128]{1,0:T(1,128)}', space=vmem, size = 0x12000, scoped, tag = 'internal scratch']
  #allocation2 [shape = 'f32[1,128]{1,0:T(1,128)}', space=vmem, size = 0x200, scoped, tag = 'scratch operand']
  #allocation3 [shape = 'f32[1,128]{1,0:T(1,128)}', space=vmem, size = 0x200, scoped, tag = 'scratch operand']
  %s0 = inlined_call_operand.hbm [shape: f32[32,128], index: 0, kind: input, shape index: {}]
  %s1 = inlined_call_operand.hbm [shape: f32[32,128], index: 1, kind: input, shape index: {}]
  %s2 = inlined_call_operand.hbm [shape: s8[32,128], index: 2, kind: input, shape index: {}]
  %s3 = inlined_call_operand.hbm [shape: f32[1,1], index: 3, kind: output, shape index: {}]
  %s4 = sld [smem:[#allocation0]]
  $region42: #{tpu_custom_call.1} parent=0
    _
  %s6 = ssub.s32 1, %s4
  %s7 = scalar_select 0, %s6, %s4
  $region1: #{tpu_custom_call.1} parent=0
    #allocation4 [shape = 'u8[16384]{0}', space=vmem, size = 0x4000, scoped, tag = 'input window, operand 0, single buffered']
    #allocation5 [shape = 's32[1]{0}', space=sflag, size = 0x4, scoped, tag = 'scoped memory for tpu_custom_call.1']
    #allocation6 [shape = 's32[1]{0}', space=sflag, size = 0x4, scoped, tag = 'scoped memory for tpu_custom_call.1']
    #allocation7 [shape = 'u8[16384]{0}', space=vmem, size = 0x4000, scoped, tag = 'input window, operand 1, single buffered']
    #allocation8 [shape = 's32[1]{0}', space=sflag, size = 0x4, scoped, tag = 'scoped memory for tpu_custom_call.1']
    #allocation9 [shape = 'u8[4096]{0}', space=vmem, size = 0x1000, scoped, tag = 'input window, operand 2, single buffered']
    #allocation10 [shape = 'u8[512]{0}', space=vmem, size = 0x400, scoped, tag = 'output window, operand 0, single buffered']
    %8 = vsyncpa [#allocation5], 0
    %9 = vsyncpa [#allocation8], 0
    %10 = vsyncpa [#allocation6], 0
    // Predicated region
    $region2: #{tpu_custom_call.1} parent=1 // pred_check
      _
    $region3: #{tpu_custom_call.1} parent=1 // pred_check_branch
      %12 = sbr.rel (0) target = $region5
    $region4: #{tpu_custom_call.1} parent=1 // pred_region
      %s14 = ssub.s32 512, 512
      %15 = vsyncadd [#allocation5], %s14
      %s16 = sshll.u32 [#allocation4], 4
      %s17 = int_to_ptr.vmem [resolvable:$true] %s16
      %22 = dma.hbm_to_vmem [thread:$0]  %s0, 512, %s17, [#allocation5], 128, 128, 8
    $region5: #{tpu_custom_call.1} parent=1 // pred_fallthru
      _
    // Predicated region
    $region6: #{tpu_custom_call.1} parent=1 // pred_check
      _
    $region7: #{tpu_custom_call.1} parent=1 // pred_check_branch
      %24 = sbr.rel (0) target = $region9
    $region8: #{tpu_custom_call.1} parent=1 // pred_region
      %s26 = ssub.s32 512, 512
      %27 = vsyncadd [#allocation8], %s26
      %s28 = sshll.u32 [#allocation7], 4
      %s29 = int_to_ptr.vmem [resolvable:$true] %s28
      %34 = dma.hbm_to_vmem [thread:$0]  %s1, 512, %s29, [#allocation8], 128, 128, 8
    $region9: #{tpu_custom_call.1} parent=1 // pred_fallthru
      _
    // Predicated region
    $region10: #{tpu_custom_call.1} parent=1 // pred_check
      _
    $region11: #{tpu_custom_call.1} parent=1 // pred_check_branch
      %36 = sbr.rel (0) target = $region13
    $region12: #{tpu_custom_call.1} parent=1 // pred_region
      %s38 = ssub.s32 128, 128
      %39 = vsyncadd [#allocation8], %s38
      %s41 = sshll.u32 [#allocation9], 4
      %s42 = int_to_ptr.vmem [resolvable:$true] %s41
      %44 = dma.hbm_to_vmem [thread:$0]  %s2, 128, %s42, [#allocation8]
    $region13: #{tpu_custom_call.1} parent=1 // pred_fallthru
      _
    // Predicated region
    $region14: #{tpu_custom_call.1} parent=1 // pred_check
      _
    $region15: #{tpu_custom_call.1} parent=1 // pred_check_branch
      %46 = sbr.rel (0) target = $region17
    $region16: #{tpu_custom_call.1} parent=1 // pred_region
      %47 = dma.done [#allocation5], 512
    $region17: #{tpu_custom_call.1} parent=1 // pred_fallthru
      _
    // Predicated region
    $region18: #{tpu_custom_call.1} parent=1 // pred_check
      _
    $region19: #{tpu_custom_call.1} parent=1 // pred_check_branch
      %49 = sbr.rel (0) target = $region21
    $region20: #{tpu_custom_call.1} parent=1 // pred_region
      %50 = dma.done [#allocation8], 512
    $region21: #{tpu_custom_call.1} parent=1 // pred_fallthru
      _
    // Predicated region
    $region22: #{tpu_custom_call.1} parent=1 // pred_check
      _
    $region23: #{tpu_custom_call.1} parent=1 // pred_check_branch
      %52 = sbr.rel (0) target = $region25
    $region24: #{tpu_custom_call.1} parent=1 // pred_region
      %53 = dma.done [#allocation8], 128
    $region25: #{tpu_custom_call.1} parent=1 // pred_fallthru
      _
    %p54 = scmp.eq.s32.totalorder 0, 0
    // Predicated region
    $region26: #{tpu_custom_call.1} parent=1 // pred_check
      %p55 = pneg %p54
    $region27: #{tpu_custom_call.1} parent=1 // pred_check_branch
      %57 = sbr.rel (%p55) target = $region29
    $region28: #{tpu_custom_call.1} parent=1 // pred_region
      %58 = vst [vmem:[#allocation2] sm:$0x1] 0.0
      %59 = vst [vmem:[#allocation3] sm:$0x1] 0.0
    $region29: #{tpu_custom_call.1} parent=1 // pred_fallthru
      _
    %v60 = vld [vmem:[#allocation4] sm:$0xff]
    %v61 = vld [vmem:[#allocation4 + $0x8] sm:$0xff]
    %v62 = vld [vmem:[#allocation4 + $0x10] sm:$0xff]
    %v63 = vld [vmem:[#allocation4 + $0x18] sm:$0xff]
    %v64 = vld [vmem:[#allocation7] sm:$0xff]
    %v65 = vld [vmem:[#allocation7 + $0x8] sm:$0xff]
    %v66 = vld [vmem:[#allocation7 + $0x10] sm:$0xff]
    %v67 = vld [vmem:[#allocation7 + $0x18] sm:$0xff]
    %v68 = vld [vmem:[#allocation9] sm:$0xff]
    %v69 = vunpack.c.0.s8 %v68
    %v70 = vunpack.c.1.s8 %v68
    %v71 = vunpack.c.2.s8 %v68
    %v72 = vunpack.c.3.s8 %v68
    %vm73 = vcmp.ne.s32.totalorder %v69, 4294967196
    %vm74 = vcmp.ne.s32.totalorder %v70, 4294967196
    %vm75 = vcmp.ne.s32.totalorder %v71, 4294967196
    %vm76 = vcmp.ne.s32.totalorder %v72, 4294967196
    %vm77 = vcmp.eq.s32.totalorder %v69, 0
    %vm78 = vcmp.eq.s32.totalorder %v70, 0
    %vm79 = vcmp.eq.s32.totalorder %v71, 0
    %vm80 = vcmp.eq.s32.totalorder %v72, 0
    %v81 = vsub.f32 %v64, %v60
    %v82 = vsub.f32 %v65, %v61
    %v83 = vsub.f32 %v66, %v62
    %v84 = vsub.f32 %v67, %v63
    %v85 = vsub.f32 %v60, %v64
    %v86 = vsub.f32 %v61, %v65
    %v87 = vsub.f32 %v62, %v66
    %v88 = vsub.f32 %v63, %v67
    %v89 = vsel %vm77, %v81, %v85
    %v90 = vsel %vm78, %v82, %v86
    %v91 = vsel %vm79, %v83, %v87
    %v92 = vsel %vm80, %v84, %v88
    %v93 = vmax.f32 %v89, 0.0
    %v94 = vmax.f32 %v90, 0.0
    %v95 = vmax.f32 %v91, 0.0
    %v96 = vmax.f32 %v92, 0.0
    %v97 = vand.u32 2147483647, %v89
    %v98 = vand.u32 2147483647, %v90
    %v99 = vand.u32 2147483647, %v91
    %v100 = vand.u32 2147483647, %v92
    %v101 = vsub.f32 0.0, %v97
    %v102 = vsub.f32 0.0, %v98
    %v103 = vsub.f32 0.0, %v99
    %v104 = vsub.f32 0.0, %v100
    %v105 = vmul.f32 %v101, 1.442695
    %v106 = vpow.pop %v105
    %v107 = vmul.f32 %v102, 1.442695
    %v108 = vpow.pop %v107
    %v109 = vmul.f32 %v103, 1.442695
    %v110 = vpow.pop %v109
    %v111 = vmul.f32 %v104, 1.442695
    %v112 = vpow.pop %v111
    %v113 = vadd.f32 %v106, 1.0
    %v114 = vadd.f32 %v108, 1.0
    %v115 = vadd.f32 %v110, 1.0
    %v116 = vadd.f32 %v112, 1.0
    %v117 = vlog2.pop %v113
    %v118 = vmul.f32 %v117, 0.6931472
    %v119 = vlog2.pop %v114
    %v120 = vmul.f32 %v119, 0.6931472
    %v121 = vlog2.pop %v115
    %v122 = vmul.f32 %v121, 0.6931472
    %v123 = vlog2.pop %v116
    %v124 = vmul.f32 %v123, 0.6931472
    %v125 = vadd.f32 %v93, %v118
    %v126 = vadd.f32 %v94, %v120
    %v127 = vadd.f32 %v95, %v122
    %v128 = vadd.f32 %v96, %v124
    %v129 = vsel %vm73, %v125, 0.0
    %v130 = vsel %vm74, %v126, 0.0
    %v131 = vsel %vm75, %v127, 0.0
    %v132 = vsel %vm76, %v128, 0.0
    %v133 = vld [vmem:[#allocation2] sm:$0x1]
    %v134 = vadd.f32 %v129, %v130
    %v135 = vadd.f32 %v134, %v131
    %v136 = vadd.f32 %v135, %v132
    %v137 = vrot.slane %v136, 4
    %v138 = vadd.f32 %v136, %v137
    %v139 = vrot.slane %v138, 2
    %v140 = vadd.f32 %v138, %v139
    %v141 = vrot.slane %v140, 1
    %v142 = vadd.f32 %v140, %v141
    %v143 = vadd.f32 %v133, %v142
    %144 = vst [vmem:[#allocation2] sm:$0x1] %v143
    %v145 = vld [vmem:[#allocation3] sm:$0x1]
    %v146 = vsel %vm73, 1, 0
    %v147 = vsel %vm74, 1, 0
    %v148 = vsel %vm75, 1, 0
    %v149 = vsel %vm76, 1, 0
    %v150 = vcvt.s32.f32 %v146
    %v151 = vcvt.s32.f32 %v147
    %v152 = vcvt.s32.f32 %v148
    %v153 = vcvt.s32.f32 %v149
    %v154 = vadd.f32 %v150, %v151
    %v155 = vadd.f32 %v154, %v152
    %v156 = vadd.f32 %v155, %v153
    %v157 = vrot.slane %v156, 4
    %v158 = vadd.f32 %v156, %v157
    %v159 = vrot.slane %v158, 2
    %v160 = vadd.f32 %v158, %v159
    %v161 = vrot.slane %v160, 1
    %v162 = vadd.f32 %v160, %v161
    %v163 = vadd.f32 %v145, %v162
    %164 = vst [vmem:[#allocation3] sm:$0x1] %v163
    // Predicated region
    $region30: #{tpu_custom_call.1} parent=1 // pred_check
      %p165 = pneg %p54
    $region31: #{tpu_custom_call.1} parent=1 // pred_check_branch
      %167 = sbr.rel (%p165) target = $region33
    $region32: #{tpu_custom_call.1} parent=1 // pred_region
      %v168 = vld [vmem:[#allocation2] sm:$0x1]
      %vm169 = vcmask 1040384
      %v170 = vsel %vm169, %v168, 0.0
      %171 = vadd.xlane.f32.xlu0 %v170
      %v172 = vpop.xlane.xlu0 %171
      %v173 = vld [vmem:[#allocation3] sm:$0x1]
      %v174 = vsel %vm169, %v173, 0.0
      %175 = vadd.xlane.f32.xlu0 %v174
      %v176 = vpop.xlane.xlu0 %175
      %v177 = vrcp.pop %v176
      %v178 = vmul.f32 %v172, %v177
      %vm179 = vcmask 0
      %180 = vst.msk [vmem:[#allocation10] sm:$0x1] %vm179, %v178
    $region33: #{tpu_custom_call.1} parent=1 // pred_fallthru
      _
    // Predicated region
    $region34: #{tpu_custom_call.1} parent=1 // pred_check
      _
    $region35: #{tpu_custom_call.1} parent=1 // pred_check_branch
      %182 = sbr.rel (0) target = $region37
    $region36: #{tpu_custom_call.1} parent=1 // pred_region
      %s184 = ssub.s32 16, 16
      %185 = vsyncadd [#allocation6], %s184
      %s187 = sshll.u32 [#allocation10], 4
      %s188 = int_to_ptr.vmem [resolvable:$true] %s187
      %190 = dma.vmem_to_hbm [thread:$0]  %s188, 16, %s3, [#allocation6]
    $region37: #{tpu_custom_call.1} parent=1 // pred_fallthru
      _
    // Predicated region
    $region38: #{tpu_custom_call.1} parent=1 // pred_check
      _
    $region39: #{tpu_custom_call.1} parent=1 // pred_check_branch
      %192 = sbr.rel (0) target = $region41
    $region40: #{tpu_custom_call.1} parent=1 // pred_region
      %193 = dma.done [#allocation6], 16
    $region41: #{tpu_custom_call.1} parent=1 // pred_fallthru
      _
    %194 = vsyncpa [#allocation5], 1
    %195 = vsyncpa [#allocation8], 1
    %196 = vsyncpa [#allocation6], 1

</llo_original>
